<compile_context>
chip_gen: v6e
topology: v6e:2x2x1
jax: 0.10.0
libtpu: 0.0.40
codegen_flags: <defaults>
</compile_context>

<pallas_src>
import functools
import math

import jax
import jax.numpy as jnp
from jax.experimental import pallas as pl
from jax.experimental.pallas import tpu as pltpu

_LANES = 128
_SUBLANES = 8
_MAX_TC = 2048          # max reduce-dim lanes per grid step (lane kernel)
_MAX_TR = 1024          # max rows per grid step (lane kernel)
_ROW_BLOCK = 128        # rows per in-kernel accumulator sub-block
_MAX_TL = 1024          # max lanes per grid step (sublane kernel)
_MAX_TD = 256           # max reduced rows per grid step (sublane kernel)
_MAX_FLAT_CW = 16384    # max virtual row width for the dim=None repack
_MIN_PALLAS_BYTES = 128 * 1024


def _cdiv(a, b):
    return -(-a // b)


def _round_up(x, m):
    return _cdiv(x, m) * m


@functools.lru_cache(maxsize=1)
def _vmem_config():
    """(per-input-buffer byte budget, vmem_limit_bytes), generation aware."""
    cap = None
    try:
        info = pltpu.get_tpu_info()
        cap = getattr(info, "vmem_capacity_bytes", None)
    except Exception:
        cap = None
    if cap is not None and cap >= 100 * 1024 * 1024:
        # v5e / v6e: 128 MiB physical VMEM -> bigger tiles, 64 MiB scoped limit.
        return 10 * 1024 * 1024, 64 * 1024 * 1024
    # v7x (64 MiB VMEM) or unknown: conservative, known-safe sizing.
    return 6 * 1024 * 1024, 32 * 1024 * 1024


def _acc_identity(p):
    """Identity of the combine op (also the masked-lane fill value)."""
    return float("inf") if p == -float("inf") else 0.0


def _ipow(a, n):
    """a**n for integer n >= 1 via exponentiation-by-squaring (VPU muls)."""
    result = None
    base = a
    while n:
        if n & 1:
            result = base if result is None else result * base
        n >>= 1
        if n:
            base = base * base
    return result


def _transform(x, p):
    """Elementwise map applied before the reduction (f32 in, f32 out)."""
    if p == float("inf") or p == -float("inf") or p == 1:
        return jnp.abs(x)
    if p == 0:
        return (x != 0).astype(jnp.float32)
    if p == 2:
        return x * x
    a = jnp.abs(x)
    fp = float(p)
    if fp.is_integer() and 2.0 < fp <= 16.0:
        return _ipow(a, int(fp))
    return jnp.power(a, fp)            # rare: fractional / negative / huge p


def _combine(acc, y, p):
    if p == float("inf"):
        return jnp.maximum(acc, y)
    if p == -float("inf"):
        return jnp.minimum(acc, y)
    return acc + y


# --------------------------------------------------------------------------
# Kernel 1: reduce over the last (lane) axis of a (R, C) view.
# Output: (R, 128) per-lane partials, resident across the reduce grid axis.
# --------------------------------------------------------------------------
def _lane_kernel(x_ref, o_ref, *, p, n_chunks, rb, c_total, tc, mask_cols):
    j = pl.program_id(1)

    @pl.when(j == 0)
    def _init():
        o_ref[...] = jnp.full(o_ref.shape, _acc_identity(p), dtype=o_ref.dtype)

    fill = jnp.float32(_acc_identity(p))
    if mask_cols:
        lane = jax.lax.broadcasted_iota(jnp.int32, (1, _LANES), 1)
        col0 = j * tc                     # global column of this block's start

    tr = o_ref.shape[0]
    r0 = 0
    while r0 < tr:                        # static sub-block loop
        rbs = min(rb, tr - r0)
        acc = o_ref[r0:r0 + rbs, :]       # one read per sub-block per step
        for k in range(n_chunks):         # static, unrolled lane chunks
            xk = x_ref[r0:r0 + rbs,
                       k * _LANES:(k + 1) * _LANES].astype(jnp.float32)
            y = _transform(xk, p)
            if mask_cols:
                m = (lane + (col0 + k * _LANES)) < c_total
                y = jnp.where(m, y, fill)
            acc = _combine(acc, y, p)
        o_ref[r0:r0 + rbs, :] = acc       # one write per sub-block per step
        r0 += rbs


def _pnorm_partials_2d(x2d, p):
    """x2d: (R, C) -> (R, 128) float32 per-lane partial reductions over C."""
    R, C = x2d.shape
    itemsize = x2d.dtype.itemsize
    budget, vmem_limit = _vmem_config()

    # Reduce-dim tiling: blocks of <= _MAX_TC lanes, multiple of 128.
    cp0 = _round_up(C, _LANES)
    n_cb = _cdiv(cp0, _MAX_TC)
    tc = _round_up(_cdiv(cp0, n_cb), _LANES)
    mask_cols = (tc * n_cb) != C          # ragged tail -> in-kernel mask

    # Row tiling: pick the number of row blocks first (megacore + small edge).
    max_tr = max(_SUBLANES, min(_MAX_TR, (budget // (tc * itemsize))
                                // _SUBLANES * _SUBLANES))
    if R >= 512:
        par = 4
    elif R >= 16:
        par = 2
    else:
        par = 1
    n_rblocks = max(_cdiv(R, max_tr), par)
    tr = min(max_tr, _round_up(_cdiv(R, n_rblocks), _SUBLANES))
    rb = min(_ROW_BLOCK, tr)

    grid = (_cdiv(R, tr), n_cb)
    kernel = functools.partial(_lane_kernel, p=p, n_chunks=tc // _LANES,
                               rb=rb, c_total=C, tc=tc, mask_cols=mask_cols)
    return pl.pallas_call(
        kernel,
        out_shape=jax.ShapeDtypeStruct((R, _LANES), jnp.float32),
        grid_spec=pltpu.PrefetchScalarGridSpec(
            num_scalar_prefetch=0,
            grid=grid,
            in_specs=[pl.BlockSpec((tr, tc), lambda i, j: (i, j))],
            out_specs=pl.BlockSpec((tr, _LANES), lambda i, j: (i, 0)),
        ),
        compiler_params=pltpu.CompilerParams(
            dimension_semantics=("parallel", "arbitrary"),
            vmem_limit_bytes=vmem_limit,
        ),
    )(x2d)


# --------------------------------------------------------------------------
# Kernel 2: reduce over the middle (sublane) axis of a (B, D, L) view,
# keeping the trailing contiguous dim on lanes (no moveaxis relayout).
# Output: (B, 8, L) per-sublane partials, resident across the reduce axis.
# --------------------------------------------------------------------------
def _sublane_kernel(x_ref, o_ref, *, p, d_total, td, mask_rows):
    jd = pl.program_id(2)

    @pl.when(jd == 0)
    def _init():
        o_ref[...] = jnp.full(o_ref.shape, _acc_identity(p), dtype=o_ref.dtype)

    fill = jnp.float32(_acc_identity(p))
    if mask_rows:
        sub = jax.lax.broadcasted_iota(jnp.int32, (_SUBLANES, 1), 0)
        row0 = jd * td

    acc = o_ref[0, :, :]                               # (8, tl), read once
    for s in range(td // _SUBLANES):                   # static, unrolled
        xs = x_ref[0, s * _SUBLANES:(s + 1) * _SUBLANES, :].astype(jnp.float32)
        y = _transform(xs, p)
        if mask_rows:
            m = (sub + (row0 + s * _SUBLANES)) < d_total
            y = jnp.where(m, y, fill)
        acc = _combine(acc, y, p)
    o_ref[0, :, :] = acc                               # write once


def _pnorm_partials_sublane(x3, p):
    """x3: (B, D, L) -> (B, 8, L) float32 per-sublane partials over D."""
    B, D, L = x3.shape
    itemsize = x3.dtype.itemsize
    budget, vmem_limit = _vmem_config()

    tl = min(_MAX_TL, _LANES * max(1, L // _LANES))    # lane-dense, <= L
    max_td = max(_SUBLANES, min(_MAX_TD, (budget // (tl * itemsize))
                                // _SUBLANES * _SUBLANES))
    td = min(max_td, _round_up(D, _SUBLANES))
    n_d = _cdiv(D, td)
    n_l = _cdiv(L, tl)
    mask_rows = (td * n_d) != D

    kernel = functools.partial(_sublane_kernel, p=p, d_total=D, td=td,
                               mask_rows=mask_rows)
    return pl.pallas_call(
        kernel,
        out_shape=jax.ShapeDtypeStruct((B, _SUBLANES, L), jnp.float32),
        grid_spec=pltpu.PrefetchScalarGridSpec(
            num_scalar_prefetch=0,
            grid=(B, n_l, n_d),
            in_specs=[pl.BlockSpec((1, td, tl), lambda b, l, d: (b, d, l))],
            out_specs=pl.BlockSpec((1, _SUBLANES, tl),
                                   lambda b, l, d: (b, 0, l)),
        ),
        compiler_params=pltpu.CompilerParams(
            dimension_semantics=("parallel", "parallel", "arbitrary"),
            vmem_limit_bytes=vmem_limit,
        ),
    )(x3)


def _finalize(partials, p, axis):
    """Combine partials along `axis` and apply the p-root (tiny, plain JAX)."""
    if p == float("inf"):
        return jnp.max(partials, axis=axis)
    if p == -float("inf"):
        return jnp.min(partials, axis=axis)
    r = jnp.sum(partials, axis=axis)
    if p == 2:
        return jnp.sqrt(r)
    if p in (0, 1):
        return r
    return jnp.power(r, 1.0 / p)


# ----------------------- pure-JAX reference / fallback -----------------------
def _ref_norm(x, p=2, dim=None, keepdim=False):
    if p == float("inf"):
        return jnp.max(jnp.abs(x), axis=dim, keepdims=keepdim)
    if p == -float("inf"):
        return jnp.min(jnp.abs(x), axis=dim, keepdims=keepdim)
    if p == 0:
        return jnp.sum(x != 0).astype(x.dtype)
    if p == 1:
        return jnp.sum(jnp.abs(x), axis=dim, keepdims=keepdim)
    if p == 2:
        return jnp.sqrt(jnp.sum(x * x, axis=dim, keepdims=keepdim))
    return jnp.power(
        jnp.sum(jnp.power(jnp.abs(x), p), axis=dim, keepdims=keepdim), 1.0 / p
    )


def custom_norm(x, p=2, dim=None, keepdim=False):
    """Mirror of the PyTorch CustomNorm.forward semantics."""
    if p == 0 and dim is not None:
        raise ValueError("0-norm does not support dim argument")

    x = jnp.asarray(x)
    # float64 kept on the fallback for full precision; non-floats likewise.
    if (not jnp.issubdtype(x.dtype, jnp.floating)) or x.dtype == jnp.float64:
        return _ref_norm(x, p, dim, keepdim)

    itemsize = jnp.dtype(x.dtype).itemsize
    total_bytes = x.size * itemsize
    if total_bytes < _MIN_PALLAS_BYTES:
        return _ref_norm(x, p, dim, keepdim)

    # ---------------- dim=None: full reduction over a repacked 2-D view ------
    if dim is None:
        n = x.size
        n128 = n // _LANES
        if n % _LANES != 0 or n128 < _SUBLANES:
            # TODO(synk): ragged flat sizes fall back to XLA (a pad would cost
            # a full extra HBM pass for a single-pass mem-bound reduction).
            return _ref_norm(x, p, dim, keepdim)
        kmax = min(_MAX_FLAT_CW // _LANES, n128 // _SUBLANES)
        k = 1
        for cand in range(kmax, 0, -1):
            if n128 % cand == 0:
                k = cand
                break
        cw = k * _LANES
        if cw < 512:                       # reduction factor too small
            return _ref_norm(x, p, dim, keepdim)
        rows = n // cw
        partials = _pnorm_partials_2d(x.reshape(rows, cw), p)   # free reshape
        r = _finalize(partials, p, axis=None)
        if keepdim and p != 0:
            r = r.reshape((1,) * x.ndim)
        return r.astype(x.dtype)

    d = dim % x.ndim

    # ---------------- reduce over the last (contiguous) dim ------------------
    if d == x.ndim - 1:
        lead = x.shape[:-1]
        C = x.shape[-1]
        R = int(math.prod(lead)) if lead else 1
        if C < _LANES or R < _SUBLANES:
            return _ref_norm(x, p, dim, keepdim)
        partials = _pnorm_partials_2d(x.reshape(R, C), p)        # (R, 128)
        r = _finalize(partials, p, axis=-1).reshape(lead)
        if keepdim:
            r = jnp.expand_dims(r, axis=d)
        return r.astype(x.dtype)

    # ---------------- reduce over a non-last dim (sublane kernel) ------------
    pre = int(math.prod(x.shape[:d])) if d > 0 else 1
    D = x.shape[d]
    L = int(math.prod(x.shape[d + 1:]))
    if L >= _LANES and D >= 32:
        partials = _pnorm_partials_sublane(x.reshape(pre, D, L), p)  # (pre,8,L)
        r = _finalize(partials, p, axis=1)                            # (pre, L)
        r = r.reshape(x.shape[:d] + x.shape[d + 1:])
        if keepdim:
            r = jnp.expand_dims(r, axis=d)
        return r.astype(x.dtype)

    # Small reduced extent or lane-unfriendly trailing dims: XLA handles it.
    return _ref_norm(x, p, dim, keepdim)


class CustomNorm:
    """Tiny module-like wrapper mirroring the PyTorch CustomNorm."""

    def __init__(self, p=2, dim=None, keepdim=False):
        self.p = p
        self.dim = dim
        self.keepdim = keepdim

    def __call__(self, x):
        return custom_norm(x, self.p, self.dim, self.keepdim)


if __name__ == "__main__":
    key = jax.random.PRNGKey(0)
    k1, k2, k3, k4 = jax.random.split(key, 4)

    # Small NCHW-style input consistent with the module (fallback path).
    x_small = jax.random.normal(k1, (2, 4, 16, 16), dtype=jnp.float32)
    x_small = x_small.at[0, 0, 0, :4].set(0.0)

    # Moderate input exercising the lane kernel (dim=-1) and the dim=None path.
    x_big = jax.random.normal(k2, (4, 8, 4096), dtype=jnp.float32)
    x_big = x_big.at[0, 0, :16].set(0.0)

    # Input exercising the sublane kernel (reduce dim=1, trailing dim on lanes).
    x_mid = jax.random.normal(k3, (2, 256, 512), dtype=jnp.float32)

    # Ragged input exercising the in-kernel tail masks + edge row blocks.
    x_rag = jax.random.normal(k4, (8, 33, 1000), dtype=jnp.float32)

    x_big_bf16 = x_big.astype(jnp.bfloat16)

    cases = [
        (x_small, dict(p=2, dim=None, keepdim=False), 1e-4, 1e-5),
        (x_small, dict(p=float("inf"), dim=-1, keepdim=True), 1e-4, 1e-5),
        (x_small, dict(p=0, dim=None, keepdim=False), 1e-4, 1e-5),
        (x_big, dict(p=2, dim=-1, keepdim=False), 1e-4, 1e-5),
        (x_big, dict(p=1, dim=-1, keepdim=True), 1e-4, 1e-5),
        (x_big, dict(p=-float("inf"), dim=-1, keepdim=False), 1e-4, 1e-5),
        (x_big, dict(p=3, dim=-1, keepdim=False), 1e-4, 1e-5),
        (x_big, dict(p=2, dim=None, keepdim=False), 1e-4, 1e-5),
        (x_mid, dict(p=2, dim=1, keepdim=False), 1e-4, 1e-5),
        (x_mid, dict(p=float("inf"), dim=1, keepdim=True), 1e-4, 1e-5),
        (x_rag, dict(p=2, dim=-1, keepdim=False), 1e-4, 1e-5),
        (x_rag, dict(p=3, dim=1, keepdim=False), 1e-4, 1e-5),
        (x_big_bf16, dict(p=2, dim=-1, keepdim=False), 2e-2, 1e-2),
    ]

    ok = True
    for x, cfg, rtol, atol in cases:
        mod = CustomNorm(**cfg)
        got = jax.block_until_ready(mod(x))
        want = jax.block_until_ready(
            _ref_norm(x.astype(jnp.float32), **cfg))
        if got.shape != want.shape:
            ok = False
            print("shape mismatch", x.shape, cfg, got.shape, want.shape)
            continue
        if not jnp.allclose(got.astype(jnp.float32),
                            want.astype(jnp.float32),
                            rtol=rtol, atol=atol):
            ok = False
            print("value mismatch", x.shape, x.dtype, cfg)

    if ok:
        print("KERNEL_OK")
</pallas_src>

<mosaic_0001>
module attributes {stable_mosaic.version = 11 : i64} {
  func.func @_lane_kernel(%arg0: i32, %arg1: i32, %arg2: memref<16x2048xf32, #tpu.memory_space<vmem>>, %arg3: memref<16x128xf32, #tpu.memory_space<vmem>>) attributes {dimension_semantics = [#tpu.dimension_semantics<parallel>, #tpu.dimension_semantics<arbitrary>], iteration_bounds = array<i64: 2, 2>, scalar_prefetch = 0 : i64, scratch_operands = 0 : i64, tpu.core_type = #tpu.core_type<tc>, window_params = [{transform_indices = @transform_0, window_bounds = array<i64: 16, 2048>}, {transform_indices = @transform_1, window_bounds = array<i64: 16, 128>}]} {
    %c0_i32 = arith.constant 0 : i32
    %0 = arith.cmpi eq, %arg1, %c0_i32 : i32
    %1 = arith.extui %0 : i1 to i32
    %c0_i32_0 = arith.constant 0 : i32
    %2 = arith.cmpi ne, %1, %c0_i32_0 : i32
    scf.if %2 {
      %cst = arith.constant 0.000000e+00 : f32
      %53 = vector.broadcast %cst : f32 to vector<16x128xf32>
      %c0_21 = arith.constant 0 : index
      %c0_22 = arith.constant 0 : index
      %54 = vector.load %arg3[%c0_21, %c0_22] : memref<16x128xf32, #tpu.memory_space<vmem>>, vector<16x128xf32>
      tpu.vector_store %arg3[%c0_21, %c0_22], %53 {strides = array<i32>} : memref<16x128xf32, #tpu.memory_space<vmem>>, vector<16x128xf32>,
    } else {
    }
    %c0 = arith.constant 0 : index
    %c0_1 = arith.constant 0 : index
    %3 = vector.load %arg3[%c0, %c0_1] : memref<16x128xf32, #tpu.memory_space<vmem>>, vector<16x128xf32>
    %c0_2 = arith.constant 0 : index
    %c0_3 = arith.constant 0 : index
    %4 = vector.load %arg2[%c0_2, %c0_3] : memref<16x2048xf32, #tpu.memory_space<vmem>>, vector<16x128xf32>
    %5 = arith.mulf %4, %4 : vector<16x128xf32>
    %6 = arith.addf %3, %5 : vector<16x128xf32>
    %c0_4 = arith.constant 0 : index
    %c128 = arith.constant 128 : index
    %7 = vector.load %arg2[%c0_4, %c128] : memref<16x2048xf32, #tpu.memory_space<vmem>>, vector<16x128xf32>
    %8 = arith.mulf %7, %7 : vector<16x128xf32>
    %9 = arith.addf %6, %8 : vector<16x128xf32>
    %c0_5 = arith.constant 0 : index
    %c256 = arith.constant 256 : index
    %10 = vector.load %arg2[%c0_5, %c256] : memref<16x2048xf32, #tpu.memory_space<vmem>>, vector<16x128xf32>
    %11 = arith.mulf %10, %10 : vector<16x128xf32>
    %12 = arith.addf %9, %11 : vector<16x128xf32>
    %c0_6 = arith.constant 0 : index
    %c384 = arith.constant 384 : index
    %13 = vector.load %arg2[%c0_6, %c384] : memref<16x2048xf32, #tpu.memory_space<vmem>>, vector<16x128xf32>
    %14 = arith.mulf %13, %13 : vector<16x128xf32>
    %15 = arith.addf %12, %14 : vector<16x128xf32>
    %c0_7 = arith.constant 0 : index
    %c512 = arith.constant 512 : index
    %16 = vector.load %arg2[%c0_7, %c512] : memref<16x2048xf32, #tpu.memory_space<vmem>>, vector<16x128xf32>
    %17 = arith.mulf %16, %16 : vector<16x128xf32>
    %18 = arith.addf %15, %17 : vector<16x128xf32>
    %c0_8 = arith.constant 0 : index
    %c640 = arith.constant 640 : index
    %19 = vector.load %arg2[%c0_8, %c640] : memref<16x2048xf32, #tpu.memory_space<vmem>>, vector<16x128xf32>
    %20 = arith.mulf %19, %19 : vector<16x128xf32>
    %21 = arith.addf %18, %20 : vector<16x128xf32>
    %c0_9 = arith.constant 0 : index
    %c768 = arith.constant 768 : index
    %22 = vector.load %arg2[%c0_9, %c768] : memref<16x2048xf32, #tpu.memory_space<vmem>>, vector<16x128xf32>
    %23 = arith.mulf %22, %22 : vector<16x128xf32>
    %24 = arith.addf %21, %23 : vector<16x128xf32>
    %c0_10 = arith.constant 0 : index
    %c896 = arith.constant 896 : index
    %25 = vector.load %arg2[%c0_10, %c896] : memref<16x2048xf32, #tpu.memory_space<vmem>>, vector<16x128xf32>
    %26 = arith.mulf %25, %25 : vector<16x128xf32>
    %27 = arith.addf %24, %26 : vector<16x128xf32>
    %c0_11 = arith.constant 0 : index
    %c1024 = arith.constant 1024 : index
    %28 = vector.load %arg2[%c0_11, %c1024] : memref<16x2048xf32, #tpu.memory_space<vmem>>, vector<16x128xf32>
    %29 = arith.mulf %28, %28 : vector<16x128xf32>
    %30 = arith.addf %27, %29 : vector<16x128xf32>
    %c0_12 = arith.constant 0 : index
    %c1152 = arith.constant 1152 : index
    %31 = vector.load %arg2[%c0_12, %c1152] : memref<16x2048xf32, #tpu.memory_space<vmem>>, vector<16x128xf32>
    %32 = arith.mulf %31, %31 : vector<16x128xf32>
    %33 = arith.addf %30, %32 : vector<16x128xf32>
    %c0_13 = arith.constant 0 : index
    %c1280 = arith.constant 1280 : index
    %34 = vector.load %arg2[%c0_13, %c1280] : memref<16x2048xf32, #tpu.memory_space<vmem>>, vector<16x128xf32>
    %35 = arith.mulf %34, %34 : vector<16x128xf32>
    %36 = arith.addf %33, %35 : vector<16x128xf32>
    %c0_14 = arith.constant 0 : index
    %c1408 = arith.constant 1408 : index
    %37 = vector.load %arg2[%c0_14, %c1408] : memref<16x2048xf32, #tpu.memory_space<vmem>>, vector<16x128xf32>
    %38 = arith.mulf %37, %37 : vector<16x128xf32>
    %39 = arith.addf %36, %38 : vector<16x128xf32>
    %c0_15 = arith.constant 0 : index
    %c1536 = arith.constant 1536 : index
    %40 = vector.load %arg2[%c0_15, %c1536] : memref<16x2048xf32, #tpu.memory_space<vmem>>, vector<16x128xf32>
    %41 = arith.mulf %40, %40 : vector<16x128xf32>
    %42 = arith.addf %39, %41 : vector<16x128xf32>
    %c0_16 = arith.constant 0 : index
    %c1664 = arith.constant 1664 : index
    %43 = vector.load %arg2[%c0_16, %c1664] : memref<16x2048xf32, #tpu.memory_space<vmem>>, vector<16x128xf32>
    %44 = arith.mulf %43, %43 : vector<16x128xf32>
    %45 = arith.addf %42, %44 : vector<16x128xf32>
    %c0_17 = arith.constant 0 : index
    %c1792 = arith.constant 1792 : index
    %46 = vector.load %arg2[%c0_17, %c1792] : memref<16x2048xf32, #tpu.memory_space<vmem>>, vector<16x128xf32>
    %47 = arith.mulf %46, %46 : vector<16x128xf32>
    %48 = arith.addf %45, %47 : vector<16x128xf32>
    %c0_18 = arith.constant 0 : index
    %c1920 = arith.constant 1920 : index
    %49 = vector.load %arg2[%c0_18, %c1920] : memref<16x2048xf32, #tpu.memory_space<vmem>>, vector<16x128xf32>
    %50 = arith.mulf %49, %49 : vector<16x128xf32>
    %51 = arith.addf %48, %50 : vector<16x128xf32>
    %c0_19 = arith.constant 0 : index
    %c0_20 = arith.constant 0 : index
    %52 = vector.load %arg3[%c0_19, %c0_20] : memref<16x128xf32, #tpu.memory_space<vmem>>, vector<16x128xf32>
    tpu.vector_store %arg3[%c0_19, %c0_20], %51 {strides = array<i32>} : memref<16x128xf32, #tpu.memory_space<vmem>>, vector<16x128xf32>,
    return
  }
  func.func @transform_0(%arg0: i32, %arg1: i32) -> (i32, i32) {
    %c0_i32 = arith.constant 0 : i32
    return %arg0, %arg1 : i32, i32
  }
  func.func @transform_1(%arg0: i32, %arg1: i32) -> (i32, i32) {
    %c0_i32 = arith.constant 0 : i32
    %c0_i32_0 = arith.constant 0 : i32
    return %arg0, %c0_i32 : i32, i32
  }
}

</mosaic_0001>

<llo_original>
// kernel: tpu_custom_call.1
$region0: #{tpu_custom_call.1}
  #allocation0 [shape = 'u32[]', space=smem, size = 0x4, offset = 0x4, fixed_abs, tag = 'smem constant byte address 0x4 - core index']
  #allocation1 [shape = 'u32[144,128]{1,0:T(1,128)}', space=vmem, size = 0x12000, scoped, tag = 'internal scratch']
  %s0 = inlined_call_operand.hbm [shape: f32[32,4096], index: 0, kind: input, shape index: {}]
  %s1 = inlined_call_operand.hbm [shape: f32[32,128], index: 1, kind: output, shape index: {}]
  %s2 = sld [smem:[#allocation0]]
  $region45: #{tpu_custom_call.1} parent=0
    _
  %s4 = ssub.s32 1, %s2
  %s5 = scalar_select 0, %s4, %s2
  $region1: #{tpu_custom_call.1} parent=0
    #allocation2 [shape = 'u8[262144]{0}', space=vmem, size = 0x40000, scoped, tag = 'input window, operand 0']
    #allocation3 [shape = 's32[2]{0}', space=sflag, size = 0x8, scoped, tag = 'scoped memory for tpu_custom_call.1']
    #allocation4 [shape = 's32[2]{0}', space=sflag, size = 0x8, scoped, tag = 'scoped memory for tpu_custom_call.1']
    #allocation5 [shape = 'u8[16384]{0}', space=vmem, size = 0x4000, scoped, tag = 'output window, operand 0']
    %6 = vsyncpa [#allocation3], 0
    %s7 = scalar_lea.sflag [#allocation3], 1
    %8 = vsyncpa %s7, 0
    %9 = vsyncpa [#allocation4], 0
    %s10 = scalar_lea.sflag [#allocation4], 1
    %11 = vsyncpa %s10, 0
    loop: start=0, step=1, limit=6
    $region2: #{tpu_custom_call.1} parent=1 // loop_pre_header
      _
    $region3: #{tpu_custom_call.1} parent=1 // loop_header
      %s13 = sphi 0, %s17
      %p14 = scmp.ge.s32.totalorder %s13, 6
      %s20 = sphi 0, %s32
      %s21 = sphi 0, %s28
      %s22 = sphi 0, %s20
      %s23 = sphi 0, %s21
      %s24 = sphi 0, %s22
      %s25 = sphi 0, %s23
      %s37 = sphi 0, %s39
      %s40 = sphi 0, %s37
      %s41 = sphi 0, %s40
      %s57 = sphi 0, %s41
      %s63 = sphi 0, %s65
      %s66 = sphi 0, %s63
      %s67 = sphi 0, %s66
      %s83 = sphi 0, %s67
    $region4: #{tpu_custom_call.1} parent=1 // loop_header_branch
      %16 = sbr.rel (%p14) target = $region8
    $region5: #{tpu_custom_call.1} parent=1 // loop_body
      %s18 = ssub.s32 %s13, 1
      %s19 = ssub.s32 %s13, 2
      %s26 = sadd.s32 1, %s21
      %p27 = scmp.ge.s32.totalorder %s26, 2
      %s28 = scalar_select %p27, 0, %s26
      %s29 = sadd.s32 1, %s20
      %s30 = scalar_select %p27, %s29, %s20
      %p31 = scmp.ge.s32.totalorder %s30, 2
      %s32 = scalar_select %p31, 0, %s30
      %s33 = ssub.s32 %s20, %s32
      %s34 = ssub.s32 %s21, %s28
      %s35 = sor.u32 %s33, %s34
      %p36 = scmp.eq.s32.totalorder %s35, 0
      %s38 = sadd.s32 %s37, 1
      %s39 = scalar_select %p36, %s37, %s38
      %p42 = pneg %p36
      %p43 = scmp.eq.s32.totalorder %s13, 3
      %p44 = por %p42, %p43
      %p45 = scmp.ne.s32.totalorder %s37, %s40
      %p46 = scmp.eq.s32.totalorder %s13, 0
      %p47 = por %p45, %p46
      %p48 = scmp.ne.s32.totalorder %s37, %s40
      %p49 = scmp.eq.s32.totalorder %s18, 3
      %p50 = por %p48, %p49
      %p51 = scmp.ne.s32.totalorder %s40, %s41
      %p52 = scmp.eq.s32.totalorder %s18, 0
      %p53 = por %p51, %p52
      %p54 = scmp.ne.s32.totalorder %s40, %s41
      %p55 = scmp.eq.s32.totalorder %s19, 3
      %p56 = por %p54, %p55
      %p58 = scmp.ne.s32.totalorder %s41, %s57
      %p59 = scmp.eq.s32.totalorder %s19, 0
      %p60 = por %p58, %p59
      %s61 = ssub.s32 %s20, %s32
      %p62 = scmp.eq.s32.totalorder %s61, 0
      %s64 = sadd.s32 %s63, 1
      %s65 = scalar_select %p62, %s63, %s64
      %p68 = pneg %p62
      %p69 = scmp.eq.s32.totalorder %s13, 3
      %p70 = por %p68, %p69
      %p71 = scmp.ne.s32.totalorder %s63, %s66
      %p72 = scmp.eq.s32.totalorder %s13, 0
      %p73 = por %p71, %p72
      %p74 = scmp.ne.s32.totalorder %s63, %s66
      %p75 = scmp.eq.s32.totalorder %s18, 3
      %p76 = por %p74, %p75
      %p77 = scmp.ne.s32.totalorder %s66, %s67
      %p78 = scmp.eq.s32.totalorder %s18, 0
      %p79 = por %p77, %p78
      %p80 = scmp.ne.s32.totalorder %s66, %s67
      %p81 = scmp.eq.s32.totalorder %s19, 3
      %p82 = por %p80, %p81
      %p84 = scmp.ne.s32.totalorder %s67, %s83
      %p85 = scmp.eq.s32.totalorder %s19, 0
      %p86 = por %p84, %p85
      %p87 = scmp.le.s32.totalorder 1, %s13
      %p88 = scmp.lt.s32.totalorder %s13, 5
      %p89 = pnand %p87, %p88
      %p90 = pneg %p89
      // Predicated region
      $region9: #{tpu_custom_call.1} parent=5 // pred_check
        _
      $region10: #{tpu_custom_call.1} parent=5 // pred_check_branch
        %92 = sbr.rel (%p89) target = $region12
      $region11: #{tpu_custom_call.1} parent=5 // pred_region
        %s93 = ssub.s32 %s13, 1
      $region12: #{tpu_custom_call.1} parent=5 // pred_fallthru
        _
      %p94 = scmp.lt.s32.totalorder %s13, 4
      // Predicated region
      $region13: #{tpu_custom_call.1} parent=5 // pred_check
        %p95 = pneg %p94
      $region14: #{tpu_custom_call.1} parent=5 // pred_check_branch
        %97 = sbr.rel (%p95) target = $region16
      $region15: #{tpu_custom_call.1} parent=5 // pred_region
        // Predicated region
        $region17: #{tpu_custom_call.1} parent=15 // pred_check
          %p98 = pneg %p47
        $region18: #{tpu_custom_call.1} parent=15 // pred_check_branch
          %100 = sbr.rel (%p98) target = $region20
        $region19: #{tpu_custom_call.1} parent=15 // pred_region
          %s101 = sand.u32 %s37, 1
          %s102 = scalar_lea.sflag [#allocation3], %s101
          %s103 = sand.u32 %s37, 1
          %s104 = smul.addr %s103, 256
          %s105 = scalar_lea.vmem [#allocation2], %s104
          %s106 = smul.u32 2, %s20
          %s107 = smul.u32 16, %s21
          %s109 = ssub.s32 4096, 4096
          %110 = vsyncadd %s102, %s109
          %s111 = smul.addr %s106, 32
          %s112 = sadd.s32 %s107, %s111
          %s113 = smul.addr %s112, 128
          %s114 = scalar_lea.hbm %s0, %s113
          %s115 = sshll.u32 %s105, 4
          %s116 = int_to_ptr.vmem [resolvable:$true] %s115
          %121 = dma.hbm_to_vmem [thread:$0]  %s114, 4096, %s116, %s102, 4096, 2048, 128
        $region20: #{tpu_custom_call.1} parent=15 // pred_fallthru
          _
      $region16: #{tpu_custom_call.1} parent=5 // pred_fallthru
        _
      %p122 = scmp.le.s32.totalorder 1, %s13
      %p123 = scmp.lt.s32.totalorder %s13, 5
      %p124 = pnand %p122, %p123
      %p125 = pneg %p124
      // Predicated region
      $region21: #{tpu_custom_call.1} parent=5 // pred_check
        _
      $region22: #{tpu_custom_call.1} parent=5 // pred_check_branch
        %127 = sbr.rel (%p124) target = $region24
      $region23: #{tpu_custom_call.1} parent=5 // pred_region
        %s128 = ssub.s32 %s13, 1
        %s129 = sand.u32 %s40, 1
        %s130 = scalar_lea.sflag [#allocation3], %s129
        %s131 = sand.u32 %s40, 1
        %s132 = smul.addr %s131, 256
        %s133 = scalar_lea.vmem [#allocation2], %s132
        // Predicated region
        $region25: #{tpu_custom_call.1} parent=23 // pred_check
          %p134 = pneg %p53
        $region26: #{tpu_custom_call.1} parent=23 // pred_check_branch
          %136 = sbr.rel (%p134) target = $region28
        $region27: #{tpu_custom_call.1} parent=23 // pred_region
          %137 = dma.done %s130, 4096
        $region28: #{tpu_custom_call.1} parent=23 // pred_fallthru
          _
        %s138 = sand.u32 %s40, 1
        %s139 = scalar_lea.sflag [#allocation3], %s138
        %s140 = sand.u32 %s40, 1
        %s141 = smul.addr %s140, 256
        %s142 = scalar_lea.vmem [#allocation2], %s141
        %p143 = pneg %p53
        %p144 = pneg %p50
        %p145 = pneg %p79
        %p146 = pneg %p76
        %s147 = sand.u32 %s66, 1
        %s148 = scalar_lea.sflag [#allocation4], %s147
        %s149 = sand.u32 %s66, 1
        %s150 = smul.addr %s149, 16
        %s151 = scalar_lea.vmem [#allocation5], %s150
        %s152 = smul.u32 2, %s22
        %s153 = smul.u32 16, %s23
        %s154 = smul.u32 2, %s22
        %p155 = scmp.eq.s32.totalorder %s23, 0
        // Predicated region
        $region29: #{tpu_custom_call.1} parent=23 // pred_check
          %p156 = pneg %p155
        $region30: #{tpu_custom_call.1} parent=23 // pred_check_branch
          %158 = sbr.rel (%p156) target = $region32
        $region31: #{tpu_custom_call.1} parent=23 // pred_region
          %159 = vst [vmem:[%s151] sm:$0xff] 0.0
          %160 = vst [vmem:[%s151 + $0x8] sm:$0xff] 0.0
        $region32: #{tpu_custom_call.1} parent=23 // pred_fallthru
          _
        %v161 = vld [vmem:[%s151] sm:$0xff]
        %v162 = vld [vmem:[%s151 + $0x8] sm:$0xff]
        %v163 = vld [vmem:[%s133] sm:$0xff]
        %v164 = vld [vmem:[%s133 + $0x80] sm:$0xff]
        %v165 = vmul.f32 %v163, %v163
        %v166 = vmul.f32 %v164, %v164
        %v167 = vadd.f32 %v161, %v165
        %v168 = vadd.f32 %v162, %v166
        %v169 = vld [vmem:[%s133 + $0x8] sm:$0xff]
        %v170 = vld [vmem:[%s133 + $0x88] sm:$0xff]
        %v171 = vmul.f32 %v169, %v169
        %v172 = vmul.f32 %v170, %v170
        %v173 = vadd.f32 %v167, %v171
        %v174 = vadd.f32 %v168, %v172
        %v175 = vld [vmem:[%s133 + $0x10] sm:$0xff]
        %v176 = vld [vmem:[%s133 + $0x90] sm:$0xff]
        %v177 = vmul.f32 %v175, %v175
        %v178 = vmul.f32 %v176, %v176
        %v179 = vadd.f32 %v173, %v177
        %v180 = vadd.f32 %v174, %v178
        %v181 = vld [vmem:[%s133 + $0x18] sm:$0xff]
        %v182 = vld [vmem:[%s133 + $0x98] sm:$0xff]
        %v183 = vmul.f32 %v181, %v181
        %v184 = vmul.f32 %v182, %v182
        %v185 = vadd.f32 %v179, %v183
        %v186 = vadd.f32 %v180, %v184
        %v187 = vld [vmem:[%s133 + $0x20] sm:$0xff]
        %v188 = vld [vmem:[%s133 + $0xa0] sm:$0xff]
        %v189 = vmul.f32 %v187, %v187
        %v190 = vmul.f32 %v188, %v188
        %v191 = vadd.f32 %v185, %v189
        %v192 = vadd.f32 %v186, %v190
        %v193 = vld [vmem:[%s133 + $0x28] sm:$0xff]
        %v194 = vld [vmem:[%s133 + $0xa8] sm:$0xff]
        %v195 = vmul.f32 %v193, %v193
        %v196 = vmul.f32 %v194, %v194
        %v197 = vadd.f32 %v191, %v195
        %v198 = vadd.f32 %v192, %v196
        %v199 = vld [vmem:[%s133 + $0x30] sm:$0xff]
        %v200 = vld [vmem:[%s133 + $0xb0] sm:$0xff]
        %v201 = vmul.f32 %v199, %v199
        %v202 = vmul.f32 %v200, %v200
        %v203 = vadd.f32 %v197, %v201
        %v204 = vadd.f32 %v198, %v202
        %v205 = vld [vmem:[%s133 + $0x38] sm:$0xff]
        %v206 = vld [vmem:[%s133 + $0xb8] sm:$0xff]
        %v207 = vmul.f32 %v205, %v205
        %v208 = vmul.f32 %v206, %v206
        %v209 = vadd.f32 %v203, %v207
        %v210 = vadd.f32 %v204, %v208
        %v211 = vld [vmem:[%s133 + $0x40] sm:$0xff]
        %v212 = vld [vmem:[%s133 + $0xc0] sm:$0xff]
        %v213 = vmul.f32 %v211, %v211
        %v214 = vmul.f32 %v212, %v212
        %v215 = vadd.f32 %v209, %v213
        %v216 = vadd.f32 %v210, %v214
        %v217 = vld [vmem:[%s133 + $0x48] sm:$0xff]
        %v218 = vld [vmem:[%s133 + $0xc8] sm:$0xff]
        %v219 = vmul.f32 %v217, %v217
        %v220 = vmul.f32 %v218, %v218
        %v221 = vadd.f32 %v215, %v219
        %v222 = vadd.f32 %v216, %v220
        %v223 = vld [vmem:[%s133 + $0x50] sm:$0xff]
        %v224 = vld [vmem:[%s133 + $0xd0] sm:$0xff]
        %v225 = vmul.f32 %v223, %v223
        %v226 = vmul.f32 %v224, %v224
        %v227 = vadd.f32 %v221, %v225
        %v228 = vadd.f32 %v222, %v226
        %v229 = vld [vmem:[%s133 + $0x58] sm:$0xff]
        %v230 = vld [vmem:[%s133 + $0xd8] sm:$0xff]
        %v231 = vmul.f32 %v229, %v229
        %v232 = vmul.f32 %v230, %v230
        %v233 = vadd.f32 %v227, %v231
        %v234 = vadd.f32 %v228, %v232
        %v235 = vld [vmem:[%s133 + $0x60] sm:$0xff]
        %v236 = vld [vmem:[%s133 + $0xe0] sm:$0xff]
        %v237 = vmul.f32 %v235, %v235
        %v238 = vmul.f32 %v236, %v236
        %v239 = vadd.f32 %v233, %v237
        %v240 = vadd.f32 %v234, %v238
        %v241 = vld [vmem:[%s133 + $0x68] sm:$0xff]
        %v242 = vld [vmem:[%s133 + $0xe8] sm:$0xff]
        %v243 = vmul.f32 %v241, %v241
        %v244 = vmul.f32 %v242, %v242
        %v245 = vadd.f32 %v239, %v243
        %v246 = vadd.f32 %v240, %v244
        %v247 = vld [vmem:[%s133 + $0x70] sm:$0xff]
        %v248 = vld [vmem:[%s133 + $0xf0] sm:$0xff]
        %v249 = vmul.f32 %v247, %v247
        %v250 = vmul.f32 %v248, %v248
        %v251 = vadd.f32 %v245, %v249
        %v252 = vadd.f32 %v246, %v250
        %v253 = vld [vmem:[%s133 + $0x78] sm:$0xff]
        %v254 = vld [vmem:[%s133 + $0xf8] sm:$0xff]
        %v255 = vmul.f32 %v253, %v253
        %v256 = vmul.f32 %v254, %v254
        %v257 = vadd.f32 %v251, %v255
        %v258 = vadd.f32 %v252, %v256
        %259 = vst [vmem:[%s151] sm:$0xff] %v257
        %260 = vst [vmem:[%s151 + $0x8] sm:$0xff] %v258
        %s261 = sand.u32 %s66, 1
        %s262 = scalar_lea.sflag [#allocation4], %s261
        %s263 = sand.u32 %s66, 1
        %s264 = smul.addr %s263, 16
        %s265 = scalar_lea.vmem [#allocation5], %s264
        // Predicated region
        $region33: #{tpu_custom_call.1} parent=23 // pred_check
          %p266 = pneg %p76
        $region34: #{tpu_custom_call.1} parent=23 // pred_check_branch
          %268 = sbr.rel (%p266) target = $region36
        $region35: #{tpu_custom_call.1} parent=23 // pred_region
          %s269 = smul.u32 2, %s22
          %s271 = ssub.s32 256, 256
          %272 = vsyncadd %s262, %s271
          %s273 = smul.addr %s269, 128
          %s274 = scalar_lea.hbm %s1, %s273
          %s275 = sshll.u32 %s265, 4
          %s276 = int_to_ptr.vmem [resolvable:$true] %s275
          %281 = dma.vmem_to_hbm [thread:$0]  %s276, 256, %s274, %s262, 128, 128, 8
        $region36: #{tpu_custom_call.1} parent=23 // pred_fallthru
          _
      $region24: #{tpu_custom_call.1} parent=5 // pred_fallthru
        _
      %p282 = scmp.le.s32.totalorder 2, %s13
      // Predicated region
      $region37: #{tpu_custom_call.1} parent=5 // pred_check
        %p283 = pneg %p282
      $region38: #{tpu_custom_call.1} parent=5 // pred_check_branch
        %285 = sbr.rel (%p283) target = $region40
      $region39: #{tpu_custom_call.1} parent=5 // pred_region
        %s286 = ssub.s32 %s13, 2
        // Predicated region
        $region41: #{tpu_custom_call.1} parent=39 // pred_check
          %p287 = pneg %p82
        $region42: #{tpu_custom_call.1} parent=39 // pred_check_branch
          %289 = sbr.rel (%p287) target = $region44
        $region43: #{tpu_custom_call.1} parent=39 // pred_region
          %s290 = sand.u32 %s67, 1
          %s291 = scalar_lea.sflag [#allocation4], %s290
          %s292 = sand.u32 %s67, 1
          %s293 = smul.addr %s292, 16
          %s294 = scalar_lea.vmem [#allocation5], %s293
          %295 = dma.done %s291, 256
        $region44: #{tpu_custom_call.1} parent=39 // pred_fallthru
          _
      $region40: #{tpu_custom_call.1} parent=5 // pred_fallthru
        _
    $region6: #{tpu_custom_call.1} parent=1 // loop_footer
      %s17 = sadd.s32 1, %s13
    $region7: #{tpu_custom_call.1} parent=1 // loop_footer_branch
      %12 = sbr.rel target = $region3
    $region8: #{tpu_custom_call.1} parent=1 // loop_exit
      _
    %296 = vsyncpa [#allocation3], 1
    %s297 = scalar_lea.sflag [#allocation3], 1
    %298 = vsyncpa %s297, 1
    %299 = vsyncpa [#allocation4], 1
    %s300 = scalar_lea.sflag [#allocation4], 1
    %301 = vsyncpa %s300, 1

</llo_original>
